<compile_context>
chip_gen: v7x
topology: tpu7x:2x2x1
jax: 0.10.0
libtpu: 0.0.40
codegen_flags: <defaults>
</compile_context>

<pallas_src>
import functools

import jax
import jax.numpy as jnp
from jax.experimental import pallas as pl
from jax.experimental.pallas import tpu as pltpu

HEAD_PAD = 128   # lane-dense fused head width (actor logits + critic + zero pad)


def _round_up(v, m):
    return ((v + m - 1) // m) * m


def actor_critic_kernel(x_ref, w1_ref, b1_ref, w23_ref, b23_ref, out_ref, *,
                        num_actions):
    # Cast x to the matmul operand dtype in-kernel (no wrapper-side HBM pass).
    x = x_ref[...].astype(w1_ref.dtype)                           # [TB, D_in]

    # shared = ReLU(x @ W1 + b1)   (f32 accumulate, f32 VPU work)
    h = jnp.dot(x, w1_ref[...], preferred_element_type=jnp.float32) + b1_ref[...]
    h = jnp.maximum(h, 0.0)                                       # [TB, H] f32
    h = h.astype(w23_ref.dtype)   # bf16 operand path (no-op if f32)

    # Fused heads: cols [0:A] actor logits, col A critic value, rest zero pad.
    z = jnp.dot(h, w23_ref[...], preferred_element_type=jnp.float32) + b23_ref[...]
    # z: [TB, 128] f32

    col = jax.lax.broadcasted_iota(jnp.int32, z.shape, 1)
    logits = jnp.where(col < num_actions, z, jnp.float32(-1e30))  # mask pad+critic

    m = jnp.max(logits, axis=-1, keepdims=True)
    e = jnp.exp(logits - m)                 # masked columns -> exp(-huge) == 0
    denom = jnp.sum(e, axis=-1, keepdims=True)
    probs = e / denom                       # exact division (fixes sum-to-1)

    # Lane-dense output slab: actor probs | critic value | zeros.
    out = jnp.where(col < num_actions, probs,
                    jnp.where(col == num_actions, z, 0.0))
    out_ref[...] = out.astype(out_ref.dtype)


def prepare_params(params, head_pad=HEAD_PAD, matmul_dtype=jnp.bfloat16):
    """One-time layout work: transpose, fuse actor+critic heads, pad to 128 lanes.

    params: PyTorch-convention dict (w: [out, in], b: [out]).
    Returns a dict of device arrays plus the static action count.
    """
    w1 = params["w1"].T.astype(matmul_dtype)            # [D_in, H]
    b1 = params["b1"][None, :].astype(jnp.float32)      # [1, H]
    H = w1.shape[1]
    A = params["w2"].shape[0]
    assert A + 1 <= head_pad

    w23 = jnp.zeros((H, head_pad), matmul_dtype)
    w23 = w23.at[:, :A].set(params["w2"].T.astype(matmul_dtype))
    w23 = w23.at[:, A:A + 1].set(params["w3"].T.astype(matmul_dtype))

    b23 = jnp.zeros((1, head_pad), jnp.float32)
    b23 = b23.at[0, :A].set(params["b2"].astype(jnp.float32))
    b23 = b23.at[0, A].set(params["b3"].astype(jnp.float32)[0])

    return {"w1": w1, "b1": b1, "w23": w23, "b23": b23, "num_actions": A}


@functools.partial(jax.jit, static_argnames=("num_actions", "tb", "out_dtype"))
def actor_critic_forward(x, w1, b1, w23, b23, *, num_actions, tb=None,
                         out_dtype=jnp.bfloat16):
    """x: [B, input_size].  Returns (actor [B, A], critic [B, 1]) in float32."""
    B, D_in = x.shape
    H = w1.shape[1]
    head_pad = w23.shape[1]

    if tb is None:
        # >= 2 grid blocks whenever B >= 16 (v7x megacore), up to 512 rows per
        # block at large batch (amortizes per-grid-step overhead, trivially
        # within VMEM on v5e/v6e/v7x).
        tb = max(8, min(512, _round_up(pl.cdiv(B, 2), 8)))
    n_blocks = pl.cdiv(B, tb)   # ragged edge blocks are masked by Pallas

    kernel = functools.partial(actor_critic_kernel, num_actions=num_actions)

    cost = pl.CostEstimate(
        flops=2 * B * (D_in * H + H * head_pad),
        transcendentals=B * head_pad,
        bytes_accessed=(x.size * x.dtype.itemsize
                        + w1.size * w1.dtype.itemsize
                        + w23.size * w23.dtype.itemsize
                        + b1.size * b1.dtype.itemsize
                        + b23.size * b23.dtype.itemsize
                        + B * head_pad * jnp.dtype(out_dtype).itemsize),
    )

    out = pl.pallas_call(
        kernel,
        out_shape=jax.ShapeDtypeStruct((B, head_pad), out_dtype),
        grid=(n_blocks,),
        in_specs=[
            pl.BlockSpec((tb, D_in), lambda i: (i, 0)),      # x row tile
            pl.BlockSpec((D_in, H), lambda i: (0, 0)),       # W1 (resident)
            pl.BlockSpec((1, H), lambda i: (0, 0)),          # b1 (resident)
            pl.BlockSpec((H, head_pad), lambda i: (0, 0)),   # fused W2||W3 (resident)
            pl.BlockSpec((1, head_pad), lambda i: (0, 0)),   # fused b2||b3 (resident)
        ],
        out_specs=pl.BlockSpec((tb, head_pad), lambda i: (i, 0)),
        compiler_params=pltpu.CompilerParams(
            dimension_semantics=("parallel",),   # shards rows across TCs on v7x
            vmem_limit_bytes=32 * 1024 * 1024,
        ),
        cost_estimate=cost,
    )(x, w1, b1, w23, b23)

    # Single narrow slice of the slab (one read), then split actor/critic.
    head = out[:, :num_actions + 1].astype(jnp.float32)
    actor = head[:, :num_actions]
    critic = head[:, num_actions:num_actions + 1]
    return actor, critic


def init_params(key, input_size, hidden_size, output_size):
    """Deterministic init mimicking nn.Linear default (uniform +/- 1/sqrt(fan_in))."""
    ks = jax.random.split(key, 6)

    def lin(kw, kb, fan_in, fan_out):
        bound = 1.0 / jnp.sqrt(jnp.float32(fan_in))
        w = jax.random.uniform(kw, (fan_out, fan_in), jnp.float32, -bound, bound)
        b = jax.random.uniform(kb, (fan_out,), jnp.float32, -bound, bound)
        return w, b

    w1, b1 = lin(ks[0], ks[1], input_size, hidden_size)
    w2, b2 = lin(ks[2], ks[3], hidden_size, output_size)
    w3, b3 = lin(ks[4], ks[5], hidden_size, 1)
    return {"w1": w1, "b1": b1, "w2": w2, "b2": b2, "w3": w3, "b3": b3}


if __name__ == "__main__":
    key = jax.random.PRNGKey(0)
    k_x, k_p = jax.random.split(key)

    # Small model sizes from the module; batch large enough for a 2-block grid.
    batch = 256
    input_size = 16
    hidden_size = 32
    output_size = 5

    x = jax.random.normal(k_x, (batch, input_size), jnp.float32)
    params = init_params(k_p, input_size, hidden_size, output_size)

    # One-time layout work (transposes / head fusion / lane padding); bf16 operands.
    prep = prepare_params(params)

    actor, critic = actor_critic_forward(
        x, prep["w1"], prep["b1"], prep["w23"], prep["b23"],
        num_actions=prep["num_actions"])
    actor = jax.block_until_ready(actor)
    critic = jax.block_until_ready(critic)

    # Pure-JAX reference of the PyTorch forward, mirroring the kernel's bf16
    # operand precision (f32 accumulation, f32 softmax), so the only remaining
    # delta is the bf16 output-slab rounding and matmul reduction order.
    f32 = jnp.float32
    xb = x.astype(jnp.bfloat16).astype(f32)
    w1b = params["w1"].astype(jnp.bfloat16).astype(f32)
    w2b = params["w2"].astype(jnp.bfloat16).astype(f32)
    w3b = params["w3"].astype(jnp.bfloat16).astype(f32)
    h_ref = jnp.maximum(xb @ w1b.T + params["b1"], 0.0)
    hb_ref = h_ref.astype(jnp.bfloat16).astype(f32)
    actor_ref = jax.nn.softmax(hb_ref @ w2b.T + params["b2"], axis=-1)
    critic_ref = hb_ref @ w3b.T + params["b3"][None, :]

    assert actor.shape == (batch, output_size)
    assert critic.shape == (batch, 1)
    assert jnp.allclose(actor, actor_ref, atol=5e-3, rtol=5e-3)
    assert jnp.allclose(critic, critic_ref, atol=1e-2, rtol=1e-2)
    assert jnp.allclose(jnp.sum(actor, axis=-1), 1.0, atol=5e-3)

    print("KERNEL_OK")
</pallas_src>

<mosaic_0001>
module attributes {stable_mosaic.version = 11 : i64} {
  func.func @actor_critic_kernel(%arg0: i32, %arg1: memref<128x16xf32, #tpu.memory_space<vmem>>, %arg2: memref<16x32xbf16, #tpu.memory_space<vmem>>, %arg3: memref<1x32xf32, #tpu.memory_space<vmem>>, %arg4: memref<32x128xbf16, #tpu.memory_space<vmem>>, %arg5: memref<1x128xf32, #tpu.memory_space<vmem>>, %arg6: memref<128x128xbf16, #tpu.memory_space<vmem>>) attributes {dimension_semantics = [#tpu.dimension_semantics<parallel>], iteration_bounds = array<i64: 2>, scalar_prefetch = 0 : i64, scratch_operands = 0 : i64, tpu.core_type = #tpu.core_type<tc>, window_params = [{transform_indices = @transform_0, window_bounds = array<i64: 128, 16>}, {pipeline_mode = #tpu.pipeline_mode<synchronous>, transform_indices = @transform_1, window_bounds = array<i64: 16, 32>}, {pipeline_mode = #tpu.pipeline_mode<synchronous>, transform_indices = @transform_2, window_bounds = array<i64: 1, 32>}, {pipeline_mode = #tpu.pipeline_mode<synchronous>, transform_indices = @transform_3, window_bounds = array<i64: 32, 128>}, {pipeline_mode = #tpu.pipeline_mode<synchronous>, transform_indices = @transform_4, window_bounds = array<i64: 1, 128>}, {transform_indices = @transform_5, window_bounds = array<i64: 128, 128>}]} {
    %c0 = arith.constant 0 : index
    %c0_0 = arith.constant 0 : index
    %0 = vector.load %arg1[%c0, %c0_0] : memref<128x16xf32, #tpu.memory_space<vmem>>, vector<128x16xf32>
    %1 = arith.truncf %0 : vector<128x16xf32> to vector<128x16xbf16>
    %c0_1 = arith.constant 0 : index
    %c0_2 = arith.constant 0 : index
    %2 = vector.load %arg2[%c0_1, %c0_2] : memref<16x32xbf16, #tpu.memory_space<vmem>>, vector<16x32xbf16>
    %cst = arith.constant dense<0.000000e+00> : vector<128x32xf32>
    %3 = tpu.matmul %1, %2, %cst {dimension_numbers = #tpu.dot_dimension_numbers<[1], [0], [0], [1], [0, 0, 1, 1], [], []>} : vector<128x16xbf16>, vector<16x32xbf16>, vector<128x32xf32> -> vector<128x32xf32>
    %c0_3 = arith.constant 0 : index
    %c0_4 = arith.constant 0 : index
    %4 = vector.load %arg3[%c0_3, %c0_4] : memref<1x32xf32, #tpu.memory_space<vmem>>, vector<1x32xf32>
    %5 = vector.broadcast %4 : vector<1x32xf32> to vector<128x32xf32>
    %6 = arith.addf %3, %5 : vector<128x32xf32>
    %cst_5 = arith.constant 0.000000e+00 : f32
    %7 = vector.broadcast %cst_5 : f32 to vector<128x32xf32>
    %8 = arith.maximumf %6, %7 : vector<128x32xf32>
    %9 = arith.truncf %8 : vector<128x32xf32> to vector<128x32xbf16>
    %c0_6 = arith.constant 0 : index
    %c0_7 = arith.constant 0 : index
    %10 = vector.load %arg4[%c0_6, %c0_7] : memref<32x128xbf16, #tpu.memory_space<vmem>>, vector<32x128xbf16>
    %cst_8 = arith.constant dense<0.000000e+00> : vector<128x128xf32>
    %11 = tpu.matmul %9, %10, %cst_8 {dimension_numbers = #tpu.dot_dimension_numbers<[1], [0], [0], [1], [0, 0, 1, 1], [], []>} : vector<128x32xbf16>, vector<32x128xbf16>, vector<128x128xf32> -> vector<128x128xf32>
    %c0_9 = arith.constant 0 : index
    %c0_10 = arith.constant 0 : index
    %12 = vector.load %arg5[%c0_9, %c0_10] : memref<1x128xf32, #tpu.memory_space<vmem>>, vector<1x128xf32>
    %13 = vector.broadcast %12 : vector<1x128xf32> to vector<128x128xf32>
    %14 = arith.addf %11, %13 : vector<128x128xf32>
    %15 = tpu.iota {dimensions = array<i32: 1>} : vector<128x128xi32>
    %c5_i32 = arith.constant 5 : i32
    %16 = vector.broadcast %c5_i32 : i32 to vector<128x128xi32>
    %17 = arith.cmpi slt, %15, %16 : vector<128x128xi32>
    %cst_11 = arith.constant -1.000000e+30 : f32
    %18 = vector.broadcast %cst_11 : f32 to vector<128x128xf32>
    %19 = arith.select %17, %14, %18 : vector<128x128xi1>, vector<128x128xf32>
    %cst_12 = arith.constant dense<0xFF800000> : vector<128xf32>
    %20 = vector.multi_reduction <maximumf>, %19, %cst_12 [1] : vector<128x128xf32> to vector<128xf32>
    %21 = vector.shape_cast %20 : vector<128xf32> to vector<128x1xf32>
    %22 = vector.broadcast %21 : vector<128x1xf32> to vector<128x128xf32>
    %23 = arith.subf %19, %22 : vector<128x128xf32>
    %24 = math.exp %23 : vector<128x128xf32>
    %cst_13 = arith.constant dense<0.000000e+00> : vector<128xf32>
    %25 = vector.multi_reduction <add>, %24, %cst_13 [1] : vector<128x128xf32> to vector<128xf32>
    %26 = vector.shape_cast %25 : vector<128xf32> to vector<128x1xf32>
    %27 = vector.broadcast %26 : vector<128x1xf32> to vector<128x128xf32>
    %28 = arith.divf %24, %27 : vector<128x128xf32>
    %c5_i32_14 = arith.constant 5 : i32
    %29 = vector.broadcast %c5_i32_14 : i32 to vector<128x128xi32>
    %30 = arith.cmpi slt, %15, %29 : vector<128x128xi32>
    %c5_i32_15 = arith.constant 5 : i32
    %31 = vector.broadcast %c5_i32_15 : i32 to vector<128x128xi32>
    %32 = arith.cmpi eq, %15, %31 : vector<128x128xi32>
    %cst_16 = arith.constant 0.000000e+00 : f32
    %33 = vector.broadcast %cst_16 : f32 to vector<128x128xf32>
    %34 = arith.select %32, %14, %33 : vector<128x128xi1>, vector<128x128xf32>
    %35 = arith.select %30, %28, %34 : vector<128x128xi1>, vector<128x128xf32>
    %36 = arith.truncf %35 : vector<128x128xf32> to vector<128x128xbf16>
    %c0_17 = arith.constant 0 : index
    %c0_18 = arith.constant 0 : index
    %37 = vector.load %arg6[%c0_17, %c0_18] : memref<128x128xbf16, #tpu.memory_space<vmem>>, vector<128x128xbf16>
    tpu.vector_store %arg6[%c0_17, %c0_18], %36 {strides = array<i32>} : memref<128x128xbf16, #tpu.memory_space<vmem>>, vector<128x128xbf16>,
    return
  }
  func.func @transform_0(%arg0: i32) -> (i32, i32) {
    %c0_i32 = arith.constant 0 : i32
    %c0_i32_0 = arith.constant 0 : i32
    return %arg0, %c0_i32 : i32, i32
  }
  func.func @transform_1(%arg0: i32) -> (i32, i32) {
    %c0_i32 = arith.constant 0 : i32
    %c0_i32_0 = arith.constant 0 : i32
    %c0_i32_1 = arith.constant 0 : i32
    return %c0_i32, %c0_i32_0 : i32, i32
  }
  func.func @transform_2(%arg0: i32) -> (i32, i32) {
    %c0_i32 = arith.constant 0 : i32
    %c0_i32_0 = arith.constant 0 : i32
    %c0_i32_1 = arith.constant 0 : i32
    return %c0_i32, %c0_i32_0 : i32, i32
  }
  func.func @transform_3(%arg0: i32) -> (i32, i32) {
    %c0_i32 = arith.constant 0 : i32
    %c0_i32_0 = arith.constant 0 : i32
    %c0_i32_1 = arith.constant 0 : i32
    return %c0_i32, %c0_i32_0 : i32, i32
  }
  func.func @transform_4(%arg0: i32) -> (i32, i32) {
    %c0_i32 = arith.constant 0 : i32
    %c0_i32_0 = arith.constant 0 : i32
    %c0_i32_1 = arith.constant 0 : i32
    return %c0_i32, %c0_i32_0 : i32, i32
  }
  func.func @transform_5(%arg0: i32) -> (i32, i32) {
    %c0_i32 = arith.constant 0 : i32
    %c0_i32_0 = arith.constant 0 : i32
    return %arg0, %c0_i32 : i32, i32
  }
}

</mosaic_0001>

<llo_original>
// kernel: actor_critic_forward.1
$region0: #{actor_critic_forward.1}
  #allocation0 [shape = 'u32[]', space=smem, size = 0x4, offset = 0x4, fixed_abs, tag = 'smem constant byte address 0x4 - core index']
  #allocation1 [shape = 'u32[144,128]{1,0:T(1,128)}', space=vmem, size = 0x12000, scoped, tag = 'internal scratch']
  %s0 = inlined_call_operand.vmem [shape: f32[256,16], index: 0, kind: input, shape index: {}]
  %s1 = inlined_call_operand.vmem [shape: bf16[16,32], index: 1, kind: input, shape index: {}]
  %s2 = inlined_call_operand.vmem [shape: f32[1,32], index: 2, kind: input, shape index: {}]
  %s3 = inlined_call_operand.vmem [shape: bf16[32,128], index: 3, kind: input, shape index: {}]
  %s4 = inlined_call_operand.vmem [shape: f32[1,128], index: 4, kind: input, shape index: {}]
  %s5 = inlined_call_operand.vmem [shape: bf16[256,128], index: 5, kind: output, shape index: {}]
  %s6 = sld [smem:[#allocation0]]
  $region53: #{actor_critic_forward.1} parent=0
    _
  %s8 = ssub.s32 1, %s6
  %s9 = scalar_select 0, %s8, %s6
  loop: start=0, step=1, limit=4
  $region2: #{actor_critic_forward.1} parent=0 // loop_pre_header
    _
  $region3: #{actor_critic_forward.1} parent=0 // loop_header
    %s11 = sphi 0, %s15
    %p12 = scmp.ge.s32.totalorder %s11, 4
    %s21 = sphi 0, %s23
    %s24 = sphi 0, %s21
    %s25 = sphi 0, %s24
    %s41 = sphi 0, %s25
    %s45 = sphi 0, %s45
    %s47 = sphi 0, %s45
    %s48 = sphi 0, %s47
    %s62 = sphi 0, %s48
    %s66 = sphi 0, %s66
    %s68 = sphi 0, %s66
    %s69 = sphi 0, %s68
    %s83 = sphi 0, %s69
    %s87 = sphi 0, %s87
    %s89 = sphi 0, %s87
    %s90 = sphi 0, %s89
    %s104 = sphi 0, %s90
    %s108 = sphi 0, %s108
    %s110 = sphi 0, %s108
    %s111 = sphi 0, %s110
    %s125 = sphi 0, %s111
    %s131 = sphi 0, %s133
    %s134 = sphi 0, %s131
    %s135 = sphi 0, %s134
    %s151 = sphi 0, %s135
  $region4: #{actor_critic_forward.1} parent=0 // loop_header_branch
    %14 = sbr.rel (%p12) target = $region8
  $region5: #{actor_critic_forward.1} parent=0 // loop_body
    %s16 = ssub.s32 %s11, 1
    %s17 = ssub.s32 %s11, 2
    %s18 = sadd.s32 %s11, 1
    %s19 = ssub.s32 %s11, %s18
    %p20 = scmp.eq.s32.totalorder %s19, 0
    %s22 = sadd.s32 %s21, 1
    %s23 = scalar_select %p20, %s21, %s22
    %p26 = pneg %p20
    %p27 = scmp.eq.s32.totalorder %s11, 1
    %p28 = por %p26, %p27
    %p29 = scmp.ne.s32.totalorder %s21, %s24
    %p30 = scmp.eq.s32.totalorder %s11, 0
    %p31 = por %p29, %p30
    %p32 = scmp.ne.s32.totalorder %s21, %s24
    %p33 = scmp.eq.s32.totalorder %s16, 1
    %p34 = por %p32, %p33
    %p35 = scmp.ne.s32.totalorder %s24, %s25
    %p36 = scmp.eq.s32.totalorder %s16, 0
    %p37 = por %p35, %p36
    %p38 = scmp.ne.s32.totalorder %s24, %s25
    %p39 = scmp.eq.s32.totalorder %s17, 1
    %p40 = por %p38, %p39
    %p42 = scmp.ne.s32.totalorder %s25, %s41
    %p43 = scmp.eq.s32.totalorder %s17, 0
    %p44 = por %p42, %p43
    %s46 = sadd.s32 %s45, 1
    %p49 = scmp.eq.s32.totalorder %s11, 1
    %p50 = scmp.ne.s32.totalorder %s45, %s47
    %p51 = scmp.eq.s32.totalorder %s11, 0
    %p52 = por %p50, %p51
    %p53 = scmp.ne.s32.totalorder %s45, %s47
    %p54 = scmp.eq.s32.totalorder %s16, 1
    %p55 = por %p53, %p54
    %p56 = scmp.ne.s32.totalorder %s47, %s48
    %p57 = scmp.eq.s32.totalorder %s16, 0
    %p58 = por %p56, %p57
    %p59 = scmp.ne.s32.totalorder %s47, %s48
    %p60 = scmp.eq.s32.totalorder %s17, 1
    %p61 = por %p59, %p60
    %p63 = scmp.ne.s32.totalorder %s48, %s62
    %p64 = scmp.eq.s32.totalorder %s17, 0
    %p65 = por %p63, %p64
    %s67 = sadd.s32 %s66, 1
    %p70 = scmp.eq.s32.totalorder %s11, 1
    %p71 = scmp.ne.s32.totalorder %s66, %s68
    %p72 = scmp.eq.s32.totalorder %s11, 0
    %p73 = por %p71, %p72
    %p74 = scmp.ne.s32.totalorder %s66, %s68
    %p75 = scmp.eq.s32.totalorder %s16, 1
    %p76 = por %p74, %p75
    %p77 = scmp.ne.s32.totalorder %s68, %s69
    %p78 = scmp.eq.s32.totalorder %s16, 0
    %p79 = por %p77, %p78
    %p80 = scmp.ne.s32.totalorder %s68, %s69
    %p81 = scmp.eq.s32.totalorder %s17, 1
    %p82 = por %p80, %p81
    %p84 = scmp.ne.s32.totalorder %s69, %s83
    %p85 = scmp.eq.s32.totalorder %s17, 0
    %p86 = por %p84, %p85
    %s88 = sadd.s32 %s87, 1
    %p91 = scmp.eq.s32.totalorder %s11, 1
    %p92 = scmp.ne.s32.totalorder %s87, %s89
    %p93 = scmp.eq.s32.totalorder %s11, 0
    %p94 = por %p92, %p93
    %p95 = scmp.ne.s32.totalorder %s87, %s89
    %p96 = scmp.eq.s32.totalorder %s16, 1
    %p97 = por %p95, %p96
    %p98 = scmp.ne.s32.totalorder %s89, %s90
    %p99 = scmp.eq.s32.totalorder %s16, 0
    %p100 = por %p98, %p99
    %p101 = scmp.ne.s32.totalorder %s89, %s90
    %p102 = scmp.eq.s32.totalorder %s17, 1
    %p103 = por %p101, %p102
    %p105 = scmp.ne.s32.totalorder %s90, %s104
    %p106 = scmp.eq.s32.totalorder %s17, 0
    %p107 = por %p105, %p106
    %s109 = sadd.s32 %s108, 1
    %p112 = scmp.eq.s32.totalorder %s11, 1
    %p113 = scmp.ne.s32.totalorder %s108, %s110
    %p114 = scmp.eq.s32.totalorder %s11, 0
    %p115 = por %p113, %p114
    %p116 = scmp.ne.s32.totalorder %s108, %s110
    %p117 = scmp.eq.s32.totalorder %s16, 1
    %p118 = por %p116, %p117
    %p119 = scmp.ne.s32.totalorder %s110, %s111
    %p120 = scmp.eq.s32.totalorder %s16, 0
    %p121 = por %p119, %p120
    %p122 = scmp.ne.s32.totalorder %s110, %s111
    %p123 = scmp.eq.s32.totalorder %s17, 1
    %p124 = por %p122, %p123
    %p126 = scmp.ne.s32.totalorder %s111, %s125
    %p127 = scmp.eq.s32.totalorder %s17, 0
    %p128 = por %p126, %p127
    %s129 = ssub.s32 %s11, %s18
    %p130 = scmp.eq.s32.totalorder %s129, 0
    %s132 = sadd.s32 %s131, 1
    %s133 = scalar_select %p130, %s131, %s132
    %p136 = pneg %p130
    %p137 = scmp.eq.s32.totalorder %s11, 1
    %p138 = por %p136, %p137
    %p139 = scmp.ne.s32.totalorder %s131, %s134
    %p140 = scmp.eq.s32.totalorder %s11, 0
    %p141 = por %p139, %p140
    %p142 = scmp.ne.s32.totalorder %s131, %s134
    %p143 = scmp.eq.s32.totalorder %s16, 1
    %p144 = por %p142, %p143
    %p145 = scmp.ne.s32.totalorder %s134, %s135
    %p146 = scmp.eq.s32.totalorder %s16, 0
    %p147 = por %p145, %p146
    %p148 = scmp.ne.s32.totalorder %s134, %s135
    %p149 = scmp.eq.s32.totalorder %s17, 1
    %p150 = por %p148, %p149
    %p152 = scmp.ne.s32.totalorder %s135, %s151
    %p153 = scmp.eq.s32.totalorder %s17, 0
    %p154 = por %p152, %p153
    %p155 = scmp.le.s32.totalorder 1, %s11
    %p156 = scmp.lt.s32.totalorder %s11, 3
    %p157 = pnand %p155, %p156
    %p158 = pneg %p157
    // Predicated region
    $region9: #{actor_critic_forward.1} parent=5 // pred_check
      _
    $region10: #{actor_critic_forward.1} parent=5 // pred_check_branch
      %160 = sbr.rel (%p157) target = $region12
    $region11: #{actor_critic_forward.1} parent=5 // pred_region
      %s161 = ssub.s32 %s11, 1
      // Predicated region
      $region13: #{actor_critic_forward.1} parent=11 // pred_check
        %p162 = pneg %p58
      $region14: #{actor_critic_forward.1} parent=11 // pred_check_branch
        %164 = sbr.rel (%p162) target = $region16
      $region15: #{actor_critic_forward.1} parent=11 // pred_region
        _
      $region16: #{actor_critic_forward.1} parent=11 // pred_fallthru
        _
      // Predicated region
      $region17: #{actor_critic_forward.1} parent=11 // pred_check
        %p165 = pneg %p79
      $region18: #{actor_critic_forward.1} parent=11 // pred_check_branch
        %167 = sbr.rel (%p165) target = $region20
      $region19: #{actor_critic_forward.1} parent=11 // pred_region
        _
      $region20: #{actor_critic_forward.1} parent=11 // pred_fallthru
        _
      // Predicated region
      $region21: #{actor_critic_forward.1} parent=11 // pred_check
        %p168 = pneg %p100
      $region22: #{actor_critic_forward.1} parent=11 // pred_check_branch
        %170 = sbr.rel (%p168) target = $region24
      $region23: #{actor_critic_forward.1} parent=11 // pred_region
        _
      $region24: #{actor_critic_forward.1} parent=11 // pred_fallthru
        _
      // Predicated region
      $region25: #{actor_critic_forward.1} parent=11 // pred_check
        %p171 = pneg %p121
      $region26: #{actor_critic_forward.1} parent=11 // pred_check_branch
        %173 = sbr.rel (%p171) target = $region28
      $region27: #{actor_critic_forward.1} parent=11 // pred_region
        _
      $region28: #{actor_critic_forward.1} parent=11 // pred_fallthru
        _
    $region12: #{actor_critic_forward.1} parent=5 // pred_fallthru
      _
    %p174 = scmp.lt.s32.totalorder %s11, 2
    // Predicated region
    $region29: #{actor_critic_forward.1} parent=5 // pred_check
      %p175 = pneg %p174
    $region30: #{actor_critic_forward.1} parent=5 // pred_check_branch
      %177 = sbr.rel (%p175) target = $region32
    $region31: #{actor_critic_forward.1} parent=5 // pred_region
      // Predicated region
      $region33: #{actor_critic_forward.1} parent=31 // pred_check
        %p178 = pneg %p31
      $region34: #{actor_critic_forward.1} parent=31 // pred_check_branch
        %180 = sbr.rel (%p178) target = $region36
      $region35: #{actor_critic_forward.1} parent=31 // pred_region
        %s181 = smul.u32 16, %s11
        %p182 = scmp.lt.s32.totalorder %s181, 31
        %s183 = scalar_select %p182, %s181, 31
        %s184 = smul.addr %s183, 8
        %s185 = scalar_lea.vmem %s0, %s184
        %s186 = smul.u32 16, %s11
      $region36: #{actor_critic_forward.1} parent=31 // pred_fallthru
        _
    $region32: #{actor_critic_forward.1} parent=5 // pred_fallthru
      _
    %p187 = scmp.le.s32.totalorder 1, %s11
    %p188 = scmp.lt.s32.totalorder %s11, 3
    %p189 = pnand %p187, %p188
    %p190 = pneg %p189
    // Predicated region
    $region37: #{actor_critic_forward.1} parent=5 // pred_check
      _
    $region38: #{actor_critic_forward.1} parent=5 // pred_check_branch
      %192 = sbr.rel (%p189) target = $region40
    $region39: #{actor_critic_forward.1} parent=5 // pred_region
      %s193 = ssub.s32 %s11, 1
      %s194 = smul.u32 16, %s16
      %p195 = scmp.lt.s32.totalorder %s194, 31
      %s196 = scalar_select %p195, %s194, 31
      %s197 = smul.addr %s196, 8
      %s198 = scalar_lea.vmem %s0, %s197
      %p199 = pneg %p37
      %p200 = pneg %p34
      %p201 = pneg %p58
      %p202 = pneg %p55
      %p203 = pneg %p79
      %p204 = pneg %p76
      %p205 = pneg %p100
      %p206 = pneg %p97
      %p207 = pneg %p121
      %p208 = pneg %p118
      %p209 = pneg %p147
      %p210 = pneg %p144
      %s211 = smul.u32 16, %s16
      %p212 = scmp.lt.s32.totalorder %s211, 31
      %s213 = scalar_select %p212, %s211, 31
      %s214 = smul.addr %s213, 4
      %s215 = scalar_lea.vmem %s5, %s214
      %s216 = smul.u32 16, %s16
      %p217 = scmp.lt.s32.totalorder %s216, 31
      %s218 = scalar_select %p217, %s216, 31
      %s219 = smul.addr %s218, 8
      %s220 = scalar_lea.vmem %s0, %s219
      %s221 = smul.u32 16, %s16
      %s222 = smul.u32 16, %s16
      %p223 = scmp.lt.s32.totalorder %s222, 31
      %s224 = scalar_select %p223, %s222, 31
      %s225 = smul.addr %s224, 4
      %s226 = scalar_lea.vmem %s5, %s225
      %s227 = smul.u32 16, %s16
      %v229 = vld [vmem:[%s220] sm:$0xff]
      %v230 = vld [vmem:[%s220 + $0x8] sm:$0xff]
      %v231 = vld [vmem:[%s220 + $0x10] sm:$0xff]
      %v232 = vld [vmem:[%s220 + $0x18] sm:$0xff]
      %v233 = vld [vmem:[%s220 + $0x20] sm:$0xff]
      %v234 = vld [vmem:[%s220 + $0x28] sm:$0xff]
      %v235 = vld [vmem:[%s220 + $0x30] sm:$0xff]
      %v236 = vld [vmem:[%s220 + $0x38] sm:$0xff]
      %v237 = vld [vmem:[%s220 + $0x40] sm:$0xff]
      %v238 = vld [vmem:[%s220 + $0x48] sm:$0xff]
      %v239 = vld [vmem:[%s220 + $0x50] sm:$0xff]
      %v240 = vld [vmem:[%s220 + $0x58] sm:$0xff]
      %v241 = vld [vmem:[%s220 + $0x60] sm:$0xff]
      %v242 = vld [vmem:[%s220 + $0x68] sm:$0xff]
      %v243 = vld [vmem:[%s220 + $0x70] sm:$0xff]
      %v244 = vld [vmem:[%s220 + $0x78] sm:$0xff]
      %v245 = vpack.c.bf16 %v230, %v229
      %v246 = vpack.c.bf16 %v232, %v231
      %v247 = vpack.c.bf16 %v234, %v233
      %v248 = vpack.c.bf16 %v236, %v235
      %v249 = vpack.c.bf16 %v238, %v237
      %v250 = vpack.c.bf16 %v240, %v239
      %v251 = vpack.c.bf16 %v242, %v241
      %v252 = vpack.c.bf16 %v244, %v243
      %v253 = vld [vmem:[%s1] sm:$0xf]
      %v254 = vld [vmem:[%s1 + $0x4] sm:$0xf]
      %v255 = vld [vmem:[%s2] sm:$0x1]
      %v257 = vlaneseq
      %v258 = vshrl.u32 %v257, 7
      %v259 = vsub.s32 0, %v258
      %v260 = vrot.slane %v255, %v259
      %v264 = vunpack.c.l.b16 %v253
      %v265 = vunpack.c.l.b16 %v254
      %v266 = vpack.c.b16 %v265, %v264
      %vm268 = vcmask 130048
      %v270 = vsel %vm268, %v245, 0
      %v273 = vsel %vm268, %v246, 0
      %v276 = vsel %vm268, %v247, 0
      %v279 = vsel %vm268, %v248, 0
      %v282 = vsel %vm268, %v249, 0
      %v285 = vsel %vm268, %v250, 0
      %v288 = vsel %vm268, %v251, 0
      %v291 = vsel %vm268, %v252, 0
      %293 = vmatprep.subr.bf16.mxu0 0
      %294 = vmatpush1.bf16.msra.mxu0 %v266
      %295 = vmatprep.subr.bf16.mxu0 0
      %296 = vmatpush1.bf16.msra.mxu0 0
      %297 = vmatprep.subr.bf16.mxu0 0
      %298 = vmatpush1.bf16.msra.mxu0 0
      %299 = vmatprep.subr.bf16.mxu0 0
      %300 = vmatpush1.bf16.msra.mxu0 0
      %301 = vmatprep.subr.bf16.mxu0 0
      %302 = vmatpush1.bf16.msra.mxu0 0
      %303 = vmatprep.subr.bf16.mxu0 0
      %304 = vmatpush1.bf16.msra.mxu0 0
      %305 = vmatprep.subr.bf16.mxu0 0
      %306 = vmatpush1.bf16.msra.mxu0 0
      %307 = vmatprep.subr.bf16.mxu0 0
      %308 = vmatpush1.bf16.msra.mxu0 0
      %309 = vmatprep.subr.bf16.mxu0 0
      %310 = vmatpush1.bf16.msra.mxu0 0
      %311 = vmatprep.subr.bf16.mxu0 0
      %312 = vmatpush1.bf16.msra.mxu0 0
      %313 = vmatprep.subr.bf16.mxu0 0
      %314 = vmatpush1.bf16.msra.mxu0 0
      %315 = vmatprep.subr.bf16.mxu0 0
      %316 = vmatpush1.bf16.msra.mxu0 0
      %317 = vmatprep.subr.bf16.mxu0 0
      %318 = vmatpush1.bf16.msra.mxu0 0
      %319 = vmatprep.subr.bf16.mxu0 0
      %320 = vmatpush1.bf16.msra.mxu0 0
      %321 = vmatprep.subr.bf16.mxu0 0
      %322 = vmatpush1.bf16.msra.mxu0 0
      %323 = vmatprep.subr.bf16.mxu0 0
      %324 = vmatpush1.bf16.msra.mxu0 0
      %325 = vmatprep.mubr.bf16.mxu0 0
      %326 = vmatmul.mubr.bf16.gmra.mrb[0].mxu0 %v270
      %v327 = vpop.f32.mrb[0].mxu0
      %v328 = vadd.f32 %v260, %v327
      %v329 = vpop.f32.mrb[0].mxu0
      %v330 = vpop.f32.mrb[0].mxu0
      %v331 = vadd.f32 %v260, %v330
      %v332 = vpop.f32.mrb[0].mxu0
      %333 = vmatprep.mubr.bf16.mxu0 0
      %334 = vmatmul.mubr.bf16.gmra.mrb[0].mxu0 %v273
      %v335 = vpop.f32.mrb[0].mxu0
      %v336 = vadd.f32 %v260, %v335
      %v337 = vpop.f32.mrb[0].mxu0
      %v338 = vpop.f32.mrb[0].mxu0
      %v339 = vadd.f32 %v260, %v338
      %v340 = vpop.f32.mrb[0].mxu0
      %341 = vmatprep.mubr.bf16.mxu0 0
      %342 = vmatmul.mubr.bf16.gmra.mrb[0].mxu0 %v276
      %v343 = vpop.f32.mrb[0].mxu0
      %v344 = vadd.f32 %v260, %v343
      %v345 = vpop.f32.mrb[0].mxu0
      %v346 = vpop.f32.mrb[0].mxu0
      %v347 = vadd.f32 %v260, %v346
      %v348 = vpop.f32.mrb[0].mxu0
      %349 = vmatprep.mubr.bf16.mxu0 0
      %350 = vmatmul.mubr.bf16.gmra.mrb[0].mxu0 %v279
      %v351 = vpop.f32.mrb[0].mxu0
      %v352 = vadd.f32 %v260, %v351
      %v353 = vpop.f32.mrb[0].mxu0
      %v354 = vpop.f32.mrb[0].mxu0
      %v355 = vadd.f32 %v260, %v354
      %v356 = vpop.f32.mrb[0].mxu0
      %357 = vmatprep.mubr.bf16.mxu0 0
      %358 = vmatmul.mubr.bf16.gmra.mrb[0].mxu0 %v282
      %v359 = vpop.f32.mrb[0].mxu0
      %v360 = vadd.f32 %v260, %v359
      %v361 = vpop.f32.mrb[0].mxu0
      %v362 = vpop.f32.mrb[0].mxu0
      %v363 = vadd.f32 %v260, %v362
      %v364 = vpop.f32.mrb[0].mxu0
      %365 = vmatprep.mubr.bf16.mxu0 0
      %366 = vmatmul.mubr.bf16.gmra.mrb[0].mxu0 %v285
      %v367 = vpop.f32.mrb[0].mxu0
      %v368 = vadd.f32 %v260, %v367
      %v369 = vpop.f32.mrb[0].mxu0
      %v370 = vpop.f32.mrb[0].mxu0
      %v371 = vadd.f32 %v260, %v370
      %v372 = vpop.f32.mrb[0].mxu0
      %373 = vmatprep.mubr.bf16.mxu0 0
      %374 = vmatmul.mubr.bf16.gmra.mrb[0].mxu0 %v288
      %v375 = vpop.f32.mrb[0].mxu0
      %v376 = vadd.f32 %v260, %v375
      %v377 = vpop.f32.mrb[0].mxu0
      %v378 = vpop.f32.mrb[0].mxu0
      %v379 = vadd.f32 %v260, %v378
      %v380 = vpop.f32.mrb[0].mxu0
      %381 = vmatprep.mubr.bf16.mxu0 0
      %382 = vmatmul.mubr.bf16.gmra.mrb[0].mxu0 %v291
      %v383 = vpop.f32.mrb[0].mxu0
      %v384 = vadd.f32 %v260, %v383
      %v385 = vpop.f32.mrb[0].mxu0
      %v386 = vpop.f32.mrb[0].mxu0
      %v387 = vadd.f32 %v260, %v386
      %v388 = vpop.f32.mrb[0].mxu0
      %389 = vdwg.mxu0
      %v390 = vmax.f32 %v328, 0.0
      %v391 = vmax.f32 %v331, 0.0
      %v392 = vmax.f32 %v336, 0.0
      %v393 = vmax.f32 %v339, 0.0
      %v394 = vmax.f32 %v344, 0.0
      %v395 = vmax.f32 %v347, 0.0
      %v396 = vmax.f32 %v352, 0.0
      %v397 = vmax.f32 %v355, 0.0
      %v398 = vmax.f32 %v360, 0.0
      %v399 = vmax.f32 %v363, 0.0
      %v400 = vmax.f32 %v368, 0.0
      %v401 = vmax.f32 %v371, 0.0
      %v402 = vmax.f32 %v376, 0.0
      %v403 = vmax.f32 %v379, 0.0
      %v404 = vmax.f32 %v384, 0.0
      %v405 = vmax.f32 %v387, 0.0
      %v406 = vpack.c.bf16 %v391, %v390
      %v407 = vpack.c.bf16 %v393, %v392
      %v408 = vpack.c.bf16 %v395, %v394
      %v409 = vpack.c.bf16 %v397, %v396
      %v410 = vpack.c.bf16 %v399, %v398
      %v411 = vpack.c.bf16 %v401, %v400
      %v412 = vpack.c.bf16 %v403, %v402
      %v413 = vpack.c.bf16 %v405, %v404
      %v414 = vld [vmem:[%s3] sm:$0xf]
      %v415 = vld [vmem:[%s3 + $0x4] sm:$0xf]
      %v416 = vld [vmem:[%s3 + $0x8] sm:$0xf]
      %v417 = vld [vmem:[%s3 + $0xc] sm:$0xf]
      %v418 = vld [vmem:[%s4] sm:$0x1]
      %v420 = vlaneseq
      %v421 = vshrl.u32 %v420, 7
      %v422 = vsub.s32 0, %v421
      %v423 = vrot.slane %v418, %v422
      %v429 = vunpack.c.l.b16 %v414
      %v430 = vunpack.c.l.b16 %v415
      %v431 = vunpack.c.l.b16 %v416
      %v432 = vunpack.c.l.b16 %v417
      %v433 = vpack.c.b16 %v430, %v429
      %v434 = vpack.c.b16 %v432, %v431
      %vm437 = vcmask 261120
      %v439 = vsel %vm437, %v406, 0
      %v442 = vsel %vm437, %v407, 0
      %v445 = vsel %vm437, %v408, 0
      %v448 = vsel %vm437, %v409, 0
      %v451 = vsel %vm437, %v410, 0
      %v454 = vsel %vm437, %v411, 0
      %v457 = vsel %vm437, %v412, 0
      %v460 = vsel %vm437, %v413, 0
      %462 = vmatprep.subr.bf16.mxu0 0
      %463 = vmatpush1.bf16.msra.mxu0 %v433
      %464 = vmatprep.subr.bf16.mxu0 0
      %465 = vmatpush1.bf16.msra.mxu0 %v434
      %466 = vmatprep.subr.bf16.mxu0 0
      %467 = vmatpush1.bf16.msra.mxu0 0
      %468 = vmatprep.subr.bf16.mxu0 0
      %469 = vmatpush1.bf16.msra.mxu0 0
      %470 = vmatprep.subr.bf16.mxu0 0
      %471 = vmatpush1.bf16.msra.mxu0 0
      %472 = vmatprep.subr.bf16.mxu0 0
      %473 = vmatpush1.bf16.msra.mxu0 0
      %474 = vmatprep.subr.bf16.mxu0 0
      %475 = vmatpush1.bf16.msra.mxu0 0
      %476 = vmatprep.subr.bf16.mxu0 0
      %477 = vmatpush1.bf16.msra.mxu0 0
      %478 = vmatprep.subr.bf16.mxu0 0
      %479 = vmatpush1.bf16.msra.mxu0 0
      %480 = vmatprep.subr.bf16.mxu0 0
      %481 = vmatpush1.bf16.msra.mxu0 0
      %482 = vmatprep.subr.bf16.mxu0 0
      %483 = vmatpush1.bf16.msra.mxu0 0
      %484 = vmatprep.subr.bf16.mxu0 0
      %485 = vmatpush1.bf16.msra.mxu0 0
      %486 = vmatprep.subr.bf16.mxu0 0
      %487 = vmatpush1.bf16.msra.mxu0 0
      %488 = vmatprep.subr.bf16.mxu0 0
      %489 = vmatpush1.bf16.msra.mxu0 0
      %490 = vmatprep.subr.bf16.mxu0 0
      %491 = vmatpush1.bf16.msra.mxu0 0
      %492 = vmatprep.subr.bf16.mxu0 0
      %493 = vmatpush1.bf16.msra.mxu0 0
      %494 = vmatprep.mubr.bf16.mxu0 0
      %495 = vmatmul.mubr.bf16.gmra.mrb[0].mxu0 %v439
      %v496 = vpop.f32.mrb[0].mxu0
      %v497 = vadd.f32 %v423, %v496
      %v498 = vpop.f32.mrb[0].mxu0
      %v499 = vpop.f32.mrb[0].mxu0
      %v500 = vadd.f32 %v423, %v499
      %v501 = vpop.f32.mrb[0].mxu0
      %502 = vmatprep.mubr.bf16.mxu0 0
      %503 = vmatmul.mubr.bf16.gmra.mrb[0].mxu0 %v442
      %v504 = vpop.f32.mrb[0].mxu0
      %v505 = vadd.f32 %v423, %v504
      %v506 = vpop.f32.mrb[0].mxu0
      %v507 = vpop.f32.mrb[0].mxu0
      %v508 = vadd.f32 %v423, %v507
      %v509 = vpop.f32.mrb[0].mxu0
      %510 = vmatprep.mubr.bf16.mxu0 0
      %511 = vmatmul.mubr.bf16.gmra.mrb[0].mxu0 %v445
      %v512 = vpop.f32.mrb[0].mxu0
      %v513 = vadd.f32 %v423, %v512
      %v514 = vpop.f32.mrb[0].mxu0
      %v515 = vpop.f32.mrb[0].mxu0
      %v516 = vadd.f32 %v423, %v515
      %v517 = vpop.f32.mrb[0].mxu0
      %518 = vmatprep.mubr.bf16.mxu0 0
      %519 = vmatmul.mubr.bf16.gmra.mrb[0].mxu0 %v448
      %v520 = vpop.f32.mrb[0].mxu0
      %v521 = vadd.f32 %v423, %v520
      %v522 = vpop.f32.mrb[0].mxu0
      %v523 = vpop.f32.mrb[0].mxu0
      %v524 = vadd.f32 %v423, %v523
      %v525 = vpop.f32.mrb[0].mxu0
      %526 = vmatprep.mubr.bf16.mxu0 0
      %527 = vmatmul.mubr.bf16.gmra.mrb[0].mxu0 %v451
      %v528 = vpop.f32.mrb[0].mxu0
      %v529 = vadd.f32 %v423, %v528
      %v530 = vpop.f32.mrb[0].mxu0
      %v531 = vpop.f32.mrb[0].mxu0
      %v532 = vadd.f32 %v423, %v531
      %v533 = vpop.f32.mrb[0].mxu0
      %534 = vmatprep.mubr.bf16.mxu0 0
      %535 = vmatmul.mubr.bf16.gmra.mrb[0].mxu0 %v454
      %v536 = vpop.f32.mrb[0].mxu0
      %v537 = vadd.f32 %v423, %v536
      %v538 = vpop.f32.mrb[0].mxu0
      %v539 = vpop.f32.mrb[0].mxu0
      %v540 = vadd.f32 %v423, %v539
      %v541 = vpop.f32.mrb[0].mxu0
      %542 = vmatprep.mubr.bf16.mxu0 0
      %543 = vmatmul.mubr.bf16.gmra.mrb[0].mxu0 %v457
      %v544 = vpop.f32.mrb[0].mxu0
      %v545 = vadd.f32 %v423, %v544
      %v546 = vpop.f32.mrb[0].mxu0
      %v547 = vpop.f32.mrb[0].mxu0
      %v548 = vadd.f32 %v423, %v547
      %v549 = vpop.f32.mrb[0].mxu0
      %550 = vmatprep.mubr.bf16.mxu0 0
      %551 = vmatmul.mubr.bf16.gmra.mrb[0].mxu0 %v460
      %v552 = vpop.f32.mrb[0].mxu0
      %v553 = vadd.f32 %v423, %v552
      %v554 = vpop.f32.mrb[0].mxu0
      %v555 = vpop.f32.mrb[0].mxu0
      %v556 = vadd.f32 %v423, %v555
      %v557 = vpop.f32.mrb[0].mxu0
      %558 = vdwg.mxu0
      %v559 = vlaneseq
      %v560 = vand.u32 %v559, 127
      %vm561 = vcmp.lt.s32.totalorder %v560, 5
      %v562 = vsel %vm561, %v497, -1e+30
      %v563 = vsel %vm561, %v500, -1e+30
      %v564 = vsel %vm561, %v505, -1e+30
      %v565 = vsel %vm561, %v508, -1e+30
      %v566 = vsel %vm561, %v513, -1e+30
      %v567 = vsel %vm561, %v516, -1e+30
      %v568 = vsel %vm561, %v521, -1e+30
      %v569 = vsel %vm561, %v524, -1e+30
      %v570 = vsel %vm561, %v529, -1e+30
      %v571 = vsel %vm561, %v532, -1e+30
      %v572 = vsel %vm561, %v537, -1e+30
      %v573 = vsel %vm561, %v540, -1e+30
      %v574 = vsel %vm561, %v545, -1e+30
      %v575 = vsel %vm561, %v548, -1e+30
      %v576 = vsel %vm561, %v553, -1e+30
      %v577 = vsel %vm561, %v556, -1e+30
      %578 = vmax.xlane.f32.xlu0 %v562
      %v579 = vpop.xlane.xlu0 %578
      %580 = vmax.xlane.f32.xlu0 %v563
      %v581 = vpop.xlane.xlu0 %580
      %582 = vmax.xlane.f32.xlu0 %v564
      %v583 = vpop.xlane.xlu0 %582
      %584 = vmax.xlane.f32.xlu0 %v565
      %v585 = vpop.xlane.xlu0 %584
      %586 = vmax.xlane.f32.xlu0 %v566
      %v587 = vpop.xlane.xlu0 %586
      %588 = vmax.xlane.f32.xlu0 %v567
      %v589 = vpop.xlane.xlu0 %588
      %590 = vmax.xlane.f32.xlu0 %v568
      %v591 = vpop.xlane.xlu0 %590
      %592 = vmax.xlane.f32.xlu0 %v569
      %v593 = vpop.xlane.xlu0 %592
      %594 = vmax.xlane.f32.xlu0 %v570
      %v595 = vpop.xlane.xlu0 %594
      %596 = vmax.xlane.f32.xlu0 %v571
      %v597 = vpop.xlane.xlu0 %596
      %598 = vmax.xlane.f32.xlu0 %v572
      %v599 = vpop.xlane.xlu0 %598
      %600 = vmax.xlane.f32.xlu0 %v573
      %v601 = vpop.xlane.xlu0 %600
      %602 = vmax.xlane.f32.xlu0 %v574
      %v603 = vpop.xlane.xlu0 %602
      %604 = vmax.xlane.f32.xlu0 %v575
      %v605 = vpop.xlane.xlu0 %604
      %606 = vmax.xlane.f32.xlu0 %v576
      %v607 = vpop.xlane.xlu0 %606
      %608 = vmax.xlane.f32.xlu0 %v577
      %v609 = vpop.xlane.xlu0 %608
      %v610 = vsub.f32 %v562, %v579
      %v611 = vsub.f32 %v563, %v581
      %v612 = vsub.f32 %v564, %v583
      %v613 = vsub.f32 %v565, %v585
      %v614 = vsub.f32 %v566, %v587
      %v615 = vsub.f32 %v567, %v589
      %v616 = vsub.f32 %v568, %v591
      %v617 = vsub.f32 %v569, %v593
      %v618 = vsub.f32 %v570, %v595
      %v619 = vsub.f32 %v571, %v597
      %v620 = vsub.f32 %v572, %v599
      %v621 = vsub.f32 %v573, %v601
      %v622 = vsub.f32 %v574, %v603
      %v623 = vsub.f32 %v575, %v605
      %v624 = vsub.f32 %v576, %v607
      %v625 = vsub.f32 %v577, %v609
      %v626 = vmul.f32 %v610, 1.442695
      %v627 = vpow.pop %v626
      %v628 = vmul.f32 %v611, 1.442695
      %v629 = vpow.pop %v628
      %v630 = vmul.f32 %v612, 1.442695
      %v631 = vpow.pop %v630
      %v632 = vmul.f32 %v613, 1.442695
      %v633 = vpow.pop %v632
      %v634 = vmul.f32 %v614, 1.442695
      %v635 = vpow.pop %v634
      %v636 = vmul.f32 %v615, 1.442695
      %v637 = vpow.pop %v636
      %v638 = vmul.f32 %v616, 1.442695
      %v639 = vpow.pop %v638
      %v640 = vmul.f32 %v617, 1.442695
      %v641 = vpow.pop %v640
      %v642 = vmul.f32 %v618, 1.442695
      %v643 = vpow.pop %v642
      %v644 = vmul.f32 %v619, 1.442695
      %v645 = vpow.pop %v644
      %v646 = vmul.f32 %v620, 1.442695
      %v647 = vpow.pop %v646
      %v648 = vmul.f32 %v621, 1.442695
      %v649 = vpow.pop %v648
      %v650 = vmul.f32 %v622, 1.442695
      %v651 = vpow.pop %v650
      %v652 = vmul.f32 %v623, 1.442695
      %v653 = vpow.pop %v652
      %v654 = vmul.f32 %v624, 1.442695
      %v655 = vpow.pop %v654
      %v656 = vmul.f32 %v625, 1.442695
      %v657 = vpow.pop %v656
      %658 = vadd.xlane.f32.xlu0 %v627
      %v659 = vpop.xlane.xlu0 %658
      %660 = vadd.xlane.f32.xlu0 %v629
      %v661 = vpop.xlane.xlu0 %660
      %662 = vadd.xlane.f32.xlu0 %v631
      %v663 = vpop.xlane.xlu0 %662
      %664 = vadd.xlane.f32.xlu0 %v633
      %v665 = vpop.xlane.xlu0 %664
      %666 = vadd.xlane.f32.xlu0 %v635
      %v667 = vpop.xlane.xlu0 %666
      %668 = vadd.xlane.f32.xlu0 %v637
      %v669 = vpop.xlane.xlu0 %668
      %670 = vadd.xlane.f32.xlu0 %v639
      %v671 = vpop.xlane.xlu0 %670
      %672 = vadd.xlane.f32.xlu0 %v641
      %v673 = vpop.xlane.xlu0 %672
      %674 = vadd.xlane.f32.xlu0 %v643
      %v675 = vpop.xlane.xlu0 %674
      %676 = vadd.xlane.f32.xlu0 %v645
      %v677 = vpop.xlane.xlu0 %676
      %678 = vadd.xlane.f32.xlu0 %v647
      %v679 = vpop.xlane.xlu0 %678
      %680 = vadd.xlane.f32.xlu0 %v649
      %v681 = vpop.xlane.xlu0 %680
      %682 = vadd.xlane.f32.xlu0 %v651
      %v683 = vpop.xlane.xlu0 %682
      %684 = vadd.xlane.f32.xlu0 %v653
      %v685 = vpop.xlane.xlu0 %684
      %686 = vadd.xlane.f32.xlu0 %v655
      %v687 = vpop.xlane.xlu0 %686
      %688 = vadd.xlane.f32.xlu0 %v657
      %v689 = vpop.xlane.xlu0 %688
      %v690 = vrcp.pop %v659
      %v691 = vmul.f32 %v627, %v690
      %v692 = vrcp.pop %v661
      %v693 = vmul.f32 %v629, %v692
      %v694 = vrcp.pop %v663
      %v695 = vmul.f32 %v631, %v694
      %v696 = vrcp.pop %v665
      %v697 = vmul.f32 %v633, %v696
      %v698 = vrcp.pop %v667
      %v699 = vmul.f32 %v635, %v698
      %v700 = vrcp.pop %v669
      %v701 = vmul.f32 %v637, %v700
      %v702 = vrcp.pop %v671
      %v703 = vmul.f32 %v639, %v702
      %v704 = vrcp.pop %v673
      %v705 = vmul.f32 %v641, %v704
      %v706 = vrcp.pop %v675
      %v707 = vmul.f32 %v643, %v706
      %v708 = vrcp.pop %v677
      %v709 = vmul.f32 %v645, %v708
      %v710 = vrcp.pop %v679
      %v711 = vmul.f32 %v647, %v710
      %v712 = vrcp.pop %v681
      %v713 = vmul.f32 %v649, %v712
      %v714 = vrcp.pop %v683
      %v715 = vmul.f32 %v651, %v714
      %v716 = vrcp.pop %v685
      %v717 = vmul.f32 %v653, %v716
      %v718 = vrcp.pop %v687
      %v719 = vmul.f32 %v655, %v718
      %v720 = vrcp.pop %v689
      %v721 = vmul.f32 %v657, %v720
      %vm722 = vcmp.eq.s32.totalorder %v560, 5
      %v723 = vsel %vm722, %v497, 0.0
      %v724 = vsel %vm722, %v500, 0.0
      %v725 = vsel %vm722, %v505, 0.0
      %v726 = vsel %vm722, %v508, 0.0
      %v727 = vsel %vm722, %v513, 0.0
      %v728 = vsel %vm722, %v516, 0.0
      %v729 = vsel %vm722, %v521, 0.0
      %v730 = vsel %vm722, %v524, 0.0
      %v731 = vsel %vm722, %v529, 0.0
      %v732 = vsel %vm722, %v532, 0.0
      %v733 = vsel %vm722, %v537, 0.0
      %v734 = vsel %vm722, %v540, 0.0
      %v735 = vsel %vm722, %v545, 0.0
      %v736 = vsel %vm722, %v548, 0.0
      %v737 = vsel %vm722, %v553, 0.0
      %v738 = vsel %vm722, %v556, 0.0
      %v739 = vsel %vm561, %v691, %v723
      %v740 = vsel %vm561, %v693, %v724
      %v741 = vsel %vm561, %v695, %v725
      %v742 = vsel %vm561, %v697, %v726
      %v743 = vsel %vm561, %v699, %v727
      %v744 = vsel %vm561, %v701, %v728
      %v745 = vsel %vm561, %v703, %v729
      %v746 = vsel %vm561, %v705, %v730
      %v747 = vsel %vm561, %v707, %v731
      %v748 = vsel %vm561, %v709, %v732
      %v749 = vsel %vm561, %v711, %v733
      %v750 = vsel %vm561, %v713, %v734
      %v751 = vsel %vm561, %v715, %v735
      %v752 = vsel %vm561, %v717, %v736
      %v753 = vsel %vm561, %v719, %v737
      %v754 = vsel %vm561, %v721, %v738
      %v755 = vpack.c.bf16 %v740, %v739
      %v756 = vpack.c.bf16 %v742, %v741
      %v757 = vpack.c.bf16 %v744, %v743
      %v758 = vpack.c.bf16 %v746, %v745
      %v759 = vpack.c.bf16 %v748, %v747
      %v760 = vpack.c.bf16 %v750, %v749
      %v761 = vpack.c.bf16 %v752, %v751
      %v762 = vpack.c.bf16 %v754, %v753
      %v771 = vunpack.c.l.b16 %v755
      %v772 = vunpack.c.h.b16 %v755
      %v773 = vunpack.c.l.b16 %v756
      %v774 = vunpack.c.h.b16 %v756
      %v775 = vunpack.c.l.b16 %v757
      %v776 = vunpack.c.h.b16 %v757
      %v777 = vunpack.c.l.b16 %v758
      %v778 = vunpack.c.h.b16 %v758
      %v779 = vunpack.c.l.b16 %v759
      %v780 = vunpack.c.h.b16 %v759
      %v781 = vunpack.c.l.b16 %v760
      %v782 = vunpack.c.h.b16 %v760
      %v783 = vunpack.c.l.b16 %v761
      %v784 = vunpack.c.h.b16 %v761
      %v785 = vunpack.c.l.b16 %v762
      %v786 = vunpack.c.h.b16 %v762
      %v787 = vpack.c.b16 %v771, %v771
      %v788 = vpack.c.b16 %v772, %v772
      %v789 = vpack.c.b16 %v773, %v773
      %v790 = vpack.c.b16 %v774, %v774
      %v791 = vpack.c.b16 %v775, %v775
      %v792 = vpack.c.b16 %v776, %v776
      %v793 = vpack.c.b16 %v777, %v777
      %v794 = vpack.c.b16 %v778, %v778
      %v795 = vpack.c.b16 %v779, %v779
      %v796 = vpack.c.b16 %v780, %v780
      %v797 = vpack.c.b16 %v781, %v781
      %v798 = vpack.c.b16 %v782, %v782
      %v799 = vpack.c.b16 %v783, %v783
      %v800 = vpack.c.b16 %v784, %v784
      %v801 = vpack.c.b16 %v785, %v785
      %v802 = vpack.c.b16 %v786, %v786
      %819 = vst [vmem:[%s226] sm:$0xf] %v787
      %820 = vst [vmem:[%s226 + $0x4] sm:$0xf] %v788
      %821 = vst [vmem:[%s226 + $0x8] sm:$0xf] %v789
      %822 = vst [vmem:[%s226 + $0xc] sm:$0xf] %v790
      %823 = vst [vmem:[%s226 + $0x10] sm:$0xf] %v791
      %824 = vst [vmem:[%s226 + $0x14] sm:$0xf] %v792
      %825 = vst [vmem:[%s226 + $0x18] sm:$0xf] %v793
      %826 = vst [vmem:[%s226 + $0x1c] sm:$0xf] %v794
      %827 = vst [vmem:[%s226 + $0x20] sm:$0xf] %v795
      %828 = vst [vmem:[%s226 + $0x24] sm:$0xf] %v796
      %829 = vst [vmem:[%s226 + $0x28] sm:$0xf] %v797
      %830 = vst [vmem:[%s226 + $0x2c] sm:$0xf] %v798
      %831 = vst [vmem:[%s226 + $0x30] sm:$0xf] %v799
      %832 = vst [vmem:[%s226 + $0x34] sm:$0xf] %v800
      %833 = vst [vmem:[%s226 + $0x38] sm:$0xf] %v801
      %834 = vst [vmem:[%s226 + $0x3c] sm:$0xf] %v802
      %s835 = smul.u32 16, %s16
      %p836 = scmp.lt.s32.totalorder %s835, 31
      %s837 = scalar_select %p836, %s835, 31
      %s838 = smul.addr %s837, 4
      %s839 = scalar_lea.vmem %s5, %s838
      // Predicated region
      $region41: #{actor_critic_forward.1} parent=39 // pred_check
        %p840 = pneg %p144
      $region42: #{actor_critic_forward.1} parent=39 // pred_check_branch
        %842 = sbr.rel (%p840) target = $region44
      $region43: #{actor_critic_forward.1} parent=39 // pred_region
        %s843 = smul.u32 16, %s16
      $region44: #{actor_critic_forward.1} parent=39 // pred_fallthru
        _
    $region40: #{actor_critic_forward.1} parent=5 // pred_fallthru
      _
    %p844 = scmp.le.s32.totalorder 2, %s11
    // Predicated region
    $region45: #{actor_critic_forward.1} parent=5 // pred_check
      %p845 = pneg %p844
    $region46: #{actor_critic_forward.1} parent=5 // pred_check_branch
      %847 = sbr.rel (%p845) target = $region48
    $region47: #{actor_critic_forward.1} parent=5 // pred_region
      %s848 = ssub.s32 %s11, 2
      // Predicated region
      $region49: #{actor_critic_forward.1} parent=47 // pred_check
        %p849 = pneg %p150
      $region50: #{actor_critic_forward.1} parent=47 // pred_check_branch
        %851 = sbr.rel (%p849) target = $region52
      $region51: #{actor_critic_forward.1} parent=47 // pred_region
        %s852 = smul.u32 16, %s17
        %p853 = scmp.lt.s32.totalorder %s852, 31
        %s854 = scalar_select %p853, %s852, 31
        %s855 = smul.addr %s854, 4
        %s856 = scalar_lea.vmem %s5, %s855
      $region52: #{actor_critic_forward.1} parent=47 // pred_fallthru
        _
    $region48: #{actor_critic_forward.1} parent=5 // pred_fallthru
      _
  $region6: #{actor_critic_forward.1} parent=0 // loop_footer
    %s15 = sadd.s32 1, %s11
  $region7: #{actor_critic_forward.1} parent=0 // loop_footer_branch
    %10 = sbr.rel target = $region3
  $region8: #{actor_critic_forward.1} parent=0 // loop_exit
    _

</llo_original>
